<compile_context>
chip_gen: v7x
topology: tpu7x:2x2x1
jax: 0.10.0
libtpu: 0.0.40
codegen_flags: <defaults>
</compile_context>

<pallas_src>
import functools

import jax
import jax.numpy as jnp
from jax import lax
from jax.experimental import pallas as pl
from jax.experimental.pallas import tpu as pltpu

MAX_INTERVAL = 12.0
_SUBLANES = 8
_LANES = 128


# --------------------------------------------------------------------------
# Packing helpers (host/XLA side, tiny)
# --------------------------------------------------------------------------
def _pitch_cols(n):
    """Lane bucket for halo-packed pitch: 8 rows of (C-2) fresh elements."""
    c = _LANES
    while _SUBLANES * (c - 2) < n:
        c *= 2
    return c


def _interval_cols(m):
    c = _LANES
    while _SUBLANES * c < m:
        c *= 2
    return c


def _pack_pitch_halo(pitch, n, cols):
    """(8, cols) halo packing: row r, lane l holds flat element r*(cols-2)+l.

    Lanes within a row are consecutive flat elements, so p[i+1] / p[i+2] are
    pure lane rolls; the last two lanes of each row duplicate the next row's
    first two elements and are masked out of every reduction.
    """
    flat = jnp.pad(pitch.astype(jnp.float32).reshape(-1),
                   (0, _SUBLANES * cols - 14 - n))        # need 7*(C-2)+C
    idx = (jnp.arange(_SUBLANES)[:, None] * (cols - 2)
           + jnp.arange(cols)[None, :])
    return flat[idx]


def _pack_intervals(iv, m, cols):
    flat = jnp.pad(iv.astype(jnp.float32).reshape(-1),
                   (0, _SUBLANES * cols - m))
    return flat.reshape(_SUBLANES, cols)


# --------------------------------------------------------------------------
# Kernel
# --------------------------------------------------------------------------
def _melodic_contour_kernel(dims_ref, x_ref, out_ref, *, cp, cm):
    # dims_ref: (2,) int32 in SMEM = [n, m]
    # x_ref:    (8, cp + cm) f32 in VMEM  (halo-packed pitch | dense intervals)
    # out_ref:  (1, 1) f32 in SMEM
    n = dims_ref[0]
    m = dims_ref[1]
    nf = n.astype(jnp.float32)
    mf = m.astype(jnp.float32)

    p = x_ref[:, :cp]          # halo-packed pitch
    iv = x_ref[:, cp:]         # dense-packed intervals (zero padded)

    # ---- interval_size_loss: mean(clamp(|iv| - 12, min=0)) ---------------
    # Zero padding contributes exactly 0 to the clamp, so no mask is needed;
    # m == 0 (PyTorch guard) falls out as 0 / 1.
    interval_sum = jnp.sum(jnp.maximum(jnp.abs(iv) - MAX_INTERVAL, 0.0))
    interval_loss = interval_sum / jnp.maximum(mf, 1.0)

    # ---- shared iotas / masks over the pitch slab ------------------------
    row = lax.broadcasted_iota(jnp.int32, (_SUBLANES, cp), 0)
    lane = lax.broadcasted_iota(jnp.int32, (_SUBLANES, cp), 1)
    fresh = lane < (cp - 2)               # last 2 lanes per row are halo copies
    g = row * (cp - 2) + lane             # flat sequence index of fresh slots
    valid = fresh & (g < n)

    # ---- contour_smoothness_loss: mean |p[i+2] - 2 p[i+1] + p[i]| --------
    p1 = pltpu.roll(p, cp - 1, axis=1)    # == roll by -1 -> p[i+1] at fresh lanes
    p2 = pltpu.roll(p, cp - 2, axis=1)    # == roll by -2 -> p[i+2] at fresh lanes
    d2 = p2 - 2.0 * p1 + p
    # nan_to_num(d2, 0.0) folded into the mask (one compare instead of ~5 ops);
    # +/-inf clamping of the original is dropped (inf pitch is out of scope).
    d2_mask = fresh & (g < n - 2) & (d2 == d2)
    abs_d2_sum = jnp.sum(jnp.where(d2_mask, jnp.abs(d2), 0.0))
    smooth_loss = jnp.where(n >= 3,
                            abs_d2_sum / jnp.maximum(nf - 2.0, 1.0), 0.0)

    # ---- phrase_arch_loss: MSE((p-mean)/std, -linspace(-1,1,n)^2) --------
    # One pass of independent masked moments; target moments are closed-form.
    m1 = jnp.maximum(nf - 1.0, 1.0)                       # n - 1 (safe)
    inv_n = 1.0 / jnp.maximum(nf, 1.0)
    x = g.astype(jnp.float32) * (2.0 / m1) - 1.0          # linspace(-1, 1, n)
    t = -(x * x)                                          # target arch
    pm = jnp.where(valid, p, 0.0)
    s_p = jnp.sum(pm)                                     # sum p
    s_pp = jnp.sum(pm * pm)                               # sum p^2
    s_pt = jnp.sum(pm * t)                                # sum p * t
    s2 = nf * (nf + 1.0) / (3.0 * m1)                     # sum_i x_i^2
    s4 = ((m1 + 1.0)
          * (3.0 * m1 * m1 * m1 + 12.0 * m1 * m1 + 8.0 * m1 - 8.0)
          / (15.0 * m1 * m1 * m1))                        # sum_i x_i^4
    s_t = -s2                                             # sum t
    s_tt = s4                                             # sum t^2
    mean = s_p * inv_n
    c2 = jnp.maximum(s_pp - mean * s_p, 0.0)              # sum (p - mean)^2
    var = c2 / m1                                         # torch.std (ddof=1)
    inv_std = jnp.where(var > 0.0, lax.rsqrt(var), 1.0)   # std==0 -> 1
    cov = s_pt - mean * s_t                               # sum (p - mean) * t
    sse = c2 * (inv_std * inv_std) - 2.0 * inv_std * cov + s_tt
    arch_loss = jnp.where(n >= 4, sse * inv_n, 0.0)

    total = interval_loss + 0.3 * smooth_loss + 0.3 * arch_loss
    out_ref[0, 0] = jnp.nan_to_num(total, nan=0.0)        # scalar only: cheap


# --------------------------------------------------------------------------
# Wrapper (compiled-kernel cache per column bucket; n/m stay dynamic)
# --------------------------------------------------------------------------
@functools.lru_cache(maxsize=None)
def _build_call(cp, cm):
    kernel = functools.partial(_melodic_contour_kernel, cp=cp, cm=cm)
    # Rough live-VMEM estimate: merged input block + ~10 full-size f32
    # temporaries on the pitch slab (rolls, d2, iotas/masks, x, t, pm).
    approx = 4 * _SUBLANES * ((cp + cm) + 10 * cp)
    kwargs = {}
    if approx > (16 << 20):                      # conservative (v5e scoped default)
        try:
            cap = pltpu.get_tpu_info().vmem_capacity_bytes
        except Exception:
            cap = 64 << 20                       # v7x physical VMEM (smallest gen)
        kwargs["compiler_params"] = pltpu.CompilerParams(
            vmem_limit_bytes=int(min(approx, cap * 3 // 4)))
    call = pl.pallas_call(
        kernel,
        out_shape=jax.ShapeDtypeStruct((1, 1), jnp.float32),
        in_specs=[
            pl.BlockSpec(memory_space=pltpu.MemorySpace.SMEM),     # [n, m]
            pl.BlockSpec((_SUBLANES, cp + cm), lambda: (0, 0)),    # merged data
        ],
        out_specs=pl.BlockSpec(memory_space=pltpu.MemorySpace.SMEM),
        **kwargs,
    )
    # Grid-less call => single resident block; nothing to multi-buffer, so no
    # pipeline_mode is needed to avoid double-buffer VMEM waste.
    return jax.jit(call)


def melodic_contour_loss(pitch_sequence, intervals):
    """JAX/Pallas equivalent of MelodicContourLoss.forward((pitch, intervals))."""
    n = int(pitch_sequence.shape[0])
    m = int(intervals.shape[0])
    if n == 0:
        return jnp.float32(0.0)                  # PyTorch early-return for empty pitch

    cp = _pitch_cols(n)
    cm = _interval_cols(m) if m > 0 else _LANES
    iv_block = (_pack_intervals(intervals, m, cm) if m > 0
                else jnp.zeros((_SUBLANES, cm), jnp.float32))
    packed = jnp.concatenate([_pack_pitch_halo(pitch_sequence, n, cp), iv_block],
                             axis=1)
    dims = jnp.array([n, m], dtype=jnp.int32)
    out = _build_call(cp, cm)(dims, packed)
    return out[0, 0]


# --------------------------------------------------------------------------
# Pure-JAX reference mirroring the PyTorch module (with its guards)
# --------------------------------------------------------------------------
def _reference(pitch_sequence, intervals):
    n = int(pitch_sequence.shape[0])
    m = int(intervals.shape[0])
    interval_loss = (jnp.mean(jnp.maximum(jnp.abs(intervals) - MAX_INTERVAL, 0.0))
                     if m > 0 else jnp.float32(0.0))
    if n >= 3:
        d1 = pitch_sequence[1:] - pitch_sequence[:-1]
        d2 = jnp.nan_to_num(d1[1:] - d1[:-1], nan=0.0)
        smooth = jnp.mean(jnp.abs(d2))
    else:
        smooth = jnp.float32(0.0)
    if n >= 4:
        x = jnp.linspace(-1.0, 1.0, n)
        target = -x ** 2
        mean = pitch_sequence.mean()
        std = jnp.std(pitch_sequence, ddof=1)
        std = jnp.where(std == 0.0, 1.0, std)
        norm = (pitch_sequence - mean) / std
        arch = jnp.mean((norm - target) ** 2)
    else:
        arch = jnp.float32(0.0)
    return jnp.nan_to_num(interval_loss + 0.3 * smooth + 0.3 * arch, nan=0.0)


if __name__ == "__main__":
    key = jax.random.PRNGKey(0)

    def make_inputs(seq_len):
        k1, k2 = jax.random.split(jax.random.fold_in(key, seq_len))
        pitch = (60.0 + 10.0 * jax.random.normal(k1, (seq_len,))).astype(jnp.float32)
        iv = (pitch[1:] - pitch[:-1]
              + 5.0 * jax.random.normal(k2, (seq_len - 1,))).astype(jnp.float32)
        return pitch, iv

    # Primary small-shape demo (seq=8), as implied by the module.
    pitch_sequence, intervals = make_inputs(8)
    loss = melodic_contour_loss(pitch_sequence, intervals)
    jax.block_until_ready(loss)
    ref = _reference(pitch_sequence, intervals)
    assert jnp.allclose(loss, ref, rtol=1e-5, atol=1e-5), (8, loss, ref)

    # Guard branches (n<3, n<4), lengths that reuse the same column bucket
    # (no recompile: n/m are SMEM scalars), and the multi-bucket large-n path.
    for seq_len in (2, 3, 37, 2000):
        ps, iv = make_inputs(seq_len)
        got = melodic_contour_loss(ps, iv)
        jax.block_until_ready(got)
        want = _reference(ps, iv)
        tol = 1e-5 if seq_len <= 64 else 1e-3
        assert jnp.allclose(got, want, rtol=tol, atol=tol), (seq_len, got, want)

    print("KERNEL_OK")
</pallas_src>

<mosaic_0001>
module attributes {stable_mosaic.version = 11 : i64} {
  func.func @_melodic_contour_kernel(%arg0: memref<2xi32, #tpu.memory_space<smem>>, %arg1: memref<8x256xf32, #tpu.memory_space<vmem>>, %arg2: memref<1x1xf32, #tpu.memory_space<smem>>) attributes {dimension_semantics = [], scalar_prefetch = 0 : i64, scratch_operands = 0 : i64, tpu.core_type = #tpu.core_type<tc>} {
    %c0 = arith.constant 0 : index
    %0 = memref.load %arg0[%c0] : memref<2xi32, #tpu.memory_space<smem>>
    %c1 = arith.constant 1 : index
    %1 = memref.load %arg0[%c1] : memref<2xi32, #tpu.memory_space<smem>>
    %2 = arith.sitofp %0 : i32 to f32
    %3 = arith.sitofp %1 : i32 to f32
    %c0_0 = arith.constant 0 : index
    %c0_1 = arith.constant 0 : index
    %4 = vector.load %arg1[%c0_0, %c0_1] : memref<8x256xf32, #tpu.memory_space<vmem>>, vector<8x128xf32>
    %c0_2 = arith.constant 0 : index
    %c128 = arith.constant 128 : index
    %5 = vector.load %arg1[%c0_2, %c128] : memref<8x256xf32, #tpu.memory_space<vmem>>, vector<8x128xf32>
    %6 = math.absf %5 : vector<8x128xf32>
    %cst = arith.constant 1.200000e+01 : f32
    %7 = vector.broadcast %cst : f32 to vector<8x128xf32>
    %8 = arith.subf %6, %7 : vector<8x128xf32>
    %cst_3 = arith.constant 0.000000e+00 : f32
    %9 = vector.broadcast %cst_3 : f32 to vector<8x128xf32>
    %10 = arith.maximumf %8, %9 : vector<8x128xf32>
    %11 = vector.shape_cast %10 : vector<8x128xf32> to vector<1x8x128xf32>
    %cst_4 = arith.constant dense<0.000000e+00> : vector<1xf32>
    %12 = vector.multi_reduction <add>, %11, %cst_4 [1, 2] : vector<1x8x128xf32> to vector<1xf32>
    %13 = vector.shape_cast %12 : vector<1xf32> to vector<1x1x1xf32>
    %14 = vector.extract %13[0, 0, 0] : f32 from vector<1x1x1xf32>
    %cst_5 = arith.constant 1.000000e+00 : f32
    %15 = arith.maximumf %3, %cst_5 : f32
    %16 = arith.divf %14, %15 : f32
    %17 = tpu.iota {dimensions = array<i32: 0>} : vector<8x128xi32>
    %18 = tpu.iota {dimensions = array<i32: 1>} : vector<8x128xi32>
    %c126_i32 = arith.constant 126 : i32
    %19 = vector.broadcast %c126_i32 : i32 to vector<8x128xi32>
    %20 = arith.cmpi slt, %18, %19 : vector<8x128xi32>
    %c126_i32_6 = arith.constant 126 : i32
    %21 = vector.broadcast %c126_i32_6 : i32 to vector<8x128xi32>
    %22 = arith.muli %17, %21 : vector<8x128xi32>
    %23 = arith.addi %22, %18 : vector<8x128xi32>
    %24 = vector.broadcast %0 : i32 to vector<8x128xi32>
    %25 = arith.cmpi slt, %23, %24 : vector<8x128xi32>
    %26 = arith.andi %20, %25 : vector<8x128xi1>
    %c127_i32 = arith.constant 127 : i32
    %27 = tpu.dynamic_rotate %4 by %c127_i32 dim 1 : vector<8x128xf32>, i32 -> vector<8x128xf32>
    %c126_i32_7 = arith.constant 126 : i32
    %28 = tpu.dynamic_rotate %4 by %c126_i32_7 dim 1 : vector<8x128xf32>, i32 -> vector<8x128xf32>
    %cst_8 = arith.constant 2.000000e+00 : f32
    %29 = vector.broadcast %cst_8 : f32 to vector<8x128xf32>
    %30 = arith.mulf %29, %27 : vector<8x128xf32>
    %31 = arith.subf %28, %30 : vector<8x128xf32>
    %32 = arith.addf %31, %4 : vector<8x128xf32>
    %c2_i32 = arith.constant 2 : i32
    %33 = arith.subi %0, %c2_i32 : i32
    %34 = vector.broadcast %33 : i32 to vector<8x128xi32>
    %35 = arith.cmpi slt, %23, %34 : vector<8x128xi32>
    %36 = arith.andi %20, %35 : vector<8x128xi1>
    %37 = arith.cmpf oeq, %32, %32 : vector<8x128xf32>
    %38 = arith.andi %36, %37 : vector<8x128xi1>
    %39 = math.absf %32 : vector<8x128xf32>
    %cst_9 = arith.constant 0.000000e+00 : f32
    %40 = vector.broadcast %cst_9 : f32 to vector<8x128xf32>
    %41 = arith.select %38, %39, %40 : vector<8x128xi1>, vector<8x128xf32>
    %42 = vector.shape_cast %41 : vector<8x128xf32> to vector<1x8x128xf32>
    %cst_10 = arith.constant dense<0.000000e+00> : vector<1xf32>
    %43 = vector.multi_reduction <add>, %42, %cst_10 [1, 2] : vector<1x8x128xf32> to vector<1xf32>
    %44 = vector.shape_cast %43 : vector<1xf32> to vector<1x1x1xf32>
    %45 = vector.extract %44[0, 0, 0] : f32 from vector<1x1x1xf32>
    %c3_i32 = arith.constant 3 : i32
    %46 = arith.cmpi sge, %0, %c3_i32 : i32
    %cst_11 = arith.constant 2.000000e+00 : f32
    %47 = arith.subf %2, %cst_11 : f32
    %cst_12 = arith.constant 1.000000e+00 : f32
    %48 = arith.maximumf %47, %cst_12 : f32
    %49 = arith.divf %45, %48 : f32
    %cst_13 = arith.constant 0.000000e+00 : f32
    %50 = arith.select %46, %49, %cst_13 : f32
    %cst_14 = arith.constant 1.000000e+00 : f32
    %51 = arith.subf %2, %cst_14 : f32
    %cst_15 = arith.constant 1.000000e+00 : f32
    %52 = arith.maximumf %51, %cst_15 : f32
    %cst_16 = arith.constant 1.000000e+00 : f32
    %53 = arith.maximumf %2, %cst_16 : f32
    %cst_17 = arith.constant 1.000000e+00 : f32
    %54 = arith.divf %cst_17, %53 : f32
    %55 = arith.sitofp %23 : vector<8x128xi32> to vector<8x128xf32>
    %cst_18 = arith.constant 2.000000e+00 : f32
    %56 = arith.divf %cst_18, %52 : f32
    %57 = vector.broadcast %56 : f32 to vector<8x128xf32>
    %58 = arith.mulf %55, %57 : vector<8x128xf32>
    %cst_19 = arith.constant 1.000000e+00 : f32
    %59 = vector.broadcast %cst_19 : f32 to vector<8x128xf32>
    %60 = arith.subf %58, %59 : vector<8x128xf32>
    %61 = arith.mulf %60, %60 : vector<8x128xf32>
    %cst_20 = arith.constant 0.000000e+00 : f32
    %62 = vector.broadcast %cst_20 : f32 to vector<8x128xf32>
    %63 = arith.subf %62, %61 : vector<8x128xf32>
    %cst_21 = arith.constant 0.000000e+00 : f32
    %64 = vector.broadcast %cst_21 : f32 to vector<8x128xf32>
    %65 = arith.select %26, %4, %64 : vector<8x128xi1>, vector<8x128xf32>
    %66 = vector.shape_cast %65 : vector<8x128xf32> to vector<1x8x128xf32>
    %cst_22 = arith.constant dense<0.000000e+00> : vector<1xf32>
    %67 = vector.multi_reduction <add>, %66, %cst_22 [1, 2] : vector<1x8x128xf32> to vector<1xf32>
    %68 = vector.shape_cast %67 : vector<1xf32> to vector<1x1x1xf32>
    %69 = vector.extract %68[0, 0, 0] : f32 from vector<1x1x1xf32>
    %70 = arith.mulf %65, %65 : vector<8x128xf32>
    %71 = vector.shape_cast %70 : vector<8x128xf32> to vector<1x8x128xf32>
    %cst_23 = arith.constant dense<0.000000e+00> : vector<1xf32>
    %72 = vector.multi_reduction <add>, %71, %cst_23 [1, 2] : vector<1x8x128xf32> to vector<1xf32>
    %73 = vector.shape_cast %72 : vector<1xf32> to vector<1x1x1xf32>
    %74 = vector.extract %73[0, 0, 0] : f32 from vector<1x1x1xf32>
    %75 = arith.mulf %65, %63 : vector<8x128xf32>
    %76 = vector.shape_cast %75 : vector<8x128xf32> to vector<1x8x128xf32>
    %cst_24 = arith.constant dense<0.000000e+00> : vector<1xf32>
    %77 = vector.multi_reduction <add>, %76, %cst_24 [1, 2] : vector<1x8x128xf32> to vector<1xf32>
    %78 = vector.shape_cast %77 : vector<1xf32> to vector<1x1x1xf32>
    %79 = vector.extract %78[0, 0, 0] : f32 from vector<1x1x1xf32>
    %cst_25 = arith.constant 1.000000e+00 : f32
    %80 = arith.addf %2, %cst_25 : f32
    %81 = arith.mulf %2, %80 : f32
    %cst_26 = arith.constant 3.000000e+00 : f32
    %82 = arith.mulf %cst_26, %52 : f32
    %83 = arith.divf %81, %82 : f32
    %cst_27 = arith.constant 1.000000e+00 : f32
    %84 = arith.addf %52, %cst_27 : f32
    %cst_28 = arith.constant 3.000000e+00 : f32
    %85 = arith.mulf %cst_28, %52 : f32
    %86 = arith.mulf %85, %52 : f32
    %87 = arith.mulf %86, %52 : f32
    %cst_29 = arith.constant 1.200000e+01 : f32
    %88 = arith.mulf %cst_29, %52 : f32
    %89 = arith.mulf %88, %52 : f32
    %90 = arith.addf %87, %89 : f32
    %cst_30 = arith.constant 8.000000e+00 : f32
    %91 = arith.mulf %cst_30, %52 : f32
    %92 = arith.addf %90, %91 : f32
    %cst_31 = arith.constant 8.000000e+00 : f32
    %93 = arith.subf %92, %cst_31 : f32
    %94 = arith.mulf %84, %93 : f32
    %cst_32 = arith.constant 1.500000e+01 : f32
    %95 = arith.mulf %cst_32, %52 : f32
    %96 = arith.mulf %95, %52 : f32
    %97 = arith.mulf %96, %52 : f32
    %98 = arith.divf %94, %97 : f32
    %cst_33 = arith.constant 0.000000e+00 : f32
    %99 = arith.subf %cst_33, %83 : f32
    %100 = arith.mulf %69, %54 : f32
    %101 = arith.mulf %100, %69 : f32
    %102 = arith.subf %74, %101 : f32
    %cst_34 = arith.constant 0.000000e+00 : f32
    %103 = arith.maximumf %102, %cst_34 : f32
    %104 = arith.divf %103, %52 : f32
    %cst_35 = arith.constant 0.000000e+00 : f32
    %105 = arith.cmpf ogt, %104, %cst_35 : f32
    %106 = math.rsqrt %104 : f32
    %cst_36 = arith.constant 1.000000e+00 : f32
    %107 = arith.select %105, %106, %cst_36 : f32
    %108 = arith.mulf %100, %99 : f32
    %109 = arith.subf %79, %108 : f32
    %110 = arith.mulf %107, %107 : f32
    %111 = arith.mulf %103, %110 : f32
    %cst_37 = arith.constant 2.000000e+00 : f32
    %112 = arith.mulf %cst_37, %107 : f32
    %113 = arith.mulf %112, %109 : f32
    %114 = arith.subf %111, %113 : f32
    %115 = arith.addf %114, %98 : f32
    %c4_i32 = arith.constant 4 : i32
    %116 = arith.cmpi sge, %0, %c4_i32 : i32
    %117 = arith.mulf %115, %54 : f32
    %cst_38 = arith.constant 0.000000e+00 : f32
    %118 = arith.select %116, %117, %cst_38 : f32
    %cst_39 = arith.constant 3.000000e-01 : f32
    %119 = arith.mulf %cst_39, %50 : f32
    %120 = arith.addf %16, %119 : f32
    %cst_40 = arith.constant 3.000000e-01 : f32
    %121 = arith.mulf %cst_40, %118 : f32
    %122 = arith.addf %120, %121 : f32
    %cst_41 = arith.constant 0.000000e+00 : f32
    %123 = arith.cmpf one, %122, %122 : f32
    %124 = arith.select %123, %cst_41, %122 : f32
    %cst_42 = arith.constant 0x7F800000 : f32
    %125 = arith.cmpf oeq, %124, %cst_42 : f32
    %cst_43 = arith.constant 3.40282347E+38 : f32
    %126 = arith.select %125, %cst_43, %124 : f32
    %cst_44 = arith.constant 0xFF800000 : f32
    %127 = arith.cmpf oeq, %126, %cst_44 : f32
    %cst_45 = arith.constant -3.40282347E+38 : f32
    %128 = arith.select %127, %cst_45, %126 : f32
    %c0_46 = arith.constant 0 : index
    %c0_47 = arith.constant 0 : index
    %129 = memref.load %arg2[%c0_46, %c0_47] : memref<1x1xf32, #tpu.memory_space<smem>>
    memref.store %128, %arg2[%c0_46, %c0_47] : memref<1x1xf32, #tpu.memory_space<smem>>
    return
  }
}

</mosaic_0001>

<llo_original>
// kernel: tpu_custom_call.1
$region0: #{tpu_custom_call.1}
  #allocation0 [shape = 'u32[]', space=smem, size = 0x4, offset = 0x4, fixed_abs, tag = 'smem constant byte address 0x4 - core index']
  #allocation1 [shape = 'u32[144,128]{1,0:T(1,128)}', space=vmem, size = 0x12000, scoped, tag = 'internal scratch']
  %s0 = inlined_call_operand.hbm [shape: s32[2], index: 0, kind: input, shape index: {}]
  %s1 = inlined_call_operand.hbm [shape: f32[8,256], index: 1, kind: input, shape index: {}]
  %s2 = inlined_call_operand.hbm [shape: f32[1,1], index: 2, kind: output, shape index: {}]
  %s3 = sld [smem:[#allocation0]]
  $region26: #{tpu_custom_call.1} parent=0
    _
  %s5 = ssub.s32 1, %s3
  %s6 = scalar_select 0, %s5, %s3
  $region1: #{tpu_custom_call.1} parent=0
    #allocation2 [shape = 'u8[512]{0}', space=smem, size = 0x200, scoped, tag = 'input window, operand 0, single buffered']
    #allocation3 [shape = 's32[1]{0}', space=sflag, size = 0x4, scoped, tag = 'scoped memory for tpu_custom_call.1']
    #allocation4 [shape = 's32[1]{0}', space=sflag, size = 0x4, scoped, tag = 'scoped memory for tpu_custom_call.1']
    #allocation5 [shape = 's32[1]{0}', space=sflag, size = 0x4, scoped, tag = 'scoped memory for tpu_custom_call.1']
    #allocation6 [shape = 'u8[8192]{0}', space=vmem, size = 0x2000, scoped, tag = 'input window, operand 1, single buffered']
    #allocation7 [shape = 'u8[512]{0}', space=smem, size = 0x200, scoped, tag = 'output window, operand 0, single buffered']
    %7 = vsyncpa [#allocation4], 0
    %8 = vsyncpa [#allocation3], 0
    %9 = vsyncpa [#allocation5], 0
    // Predicated region
    $region2: #{tpu_custom_call.1} parent=1 // pred_check
      _
    $region3: #{tpu_custom_call.1} parent=1 // pred_check_branch
      %11 = sbr.rel (0) target = $region5
    $region4: #{tpu_custom_call.1} parent=1 // pred_region
      %s13 = ssub.s32 16, 16
      %14 = vsyncadd [#allocation4], %s13
      %17 = dma.hbm_to_smem %s0, 16, [#allocation2], [#allocation4]
    $region5: #{tpu_custom_call.1} parent=1 // pred_fallthru
      _
    // Predicated region
    $region6: #{tpu_custom_call.1} parent=1 // pred_check
      _
    $region7: #{tpu_custom_call.1} parent=1 // pred_check_branch
      %19 = sbr.rel (0) target = $region9
    $region8: #{tpu_custom_call.1} parent=1 // pred_region
      %s21 = ssub.s32 256, 256
      %22 = vsyncadd [#allocation3], %s21
      %s24 = sshll.u32 [#allocation6], 4
      %s25 = int_to_ptr.vmem [resolvable:$true] %s24
      %27 = dma.hbm_to_vmem [thread:$0]  %s1, 256, %s25, [#allocation3]
    $region9: #{tpu_custom_call.1} parent=1 // pred_fallthru
      _
    // Predicated region
    $region10: #{tpu_custom_call.1} parent=1 // pred_check
      _
    $region11: #{tpu_custom_call.1} parent=1 // pred_check_branch
      %29 = sbr.rel (0) target = $region13
    $region12: #{tpu_custom_call.1} parent=1 // pred_region
      %30 = dma.done [#allocation4], 16
    $region13: #{tpu_custom_call.1} parent=1 // pred_fallthru
      _
    // Predicated region
    $region14: #{tpu_custom_call.1} parent=1 // pred_check
      _
    $region15: #{tpu_custom_call.1} parent=1 // pred_check_branch
      %32 = sbr.rel (0) target = $region17
    $region16: #{tpu_custom_call.1} parent=1 // pred_region
      %33 = dma.done [#allocation3], 256
    $region17: #{tpu_custom_call.1} parent=1 // pred_fallthru
      _
    %34 = sfence
    %s35 = sld [smem:[#allocation2]]
    %s36 = sld [smem:[#allocation2 + $0x1]]
    %s37 = scvt.s32.f32 %s35
    %s38 = scvt.s32.f32 %s36
    %v39 = vld [vmem:[#allocation6] sm:$0xff]
    %v40 = vld [vmem:[#allocation6 + $0x8] sm:$0xff]
    %v41 = vand.u32 2147483647, %v40
    %v42 = vsub.f32 %v41, 12.0
    %v43 = vmax.f32 %v42, 0.0
    %44 = vadd.xlane.f32.xlu0 %v43
    %v45 = vpop.xlane.xlu0 %44
    %v46 = vrot.slane %v45, 4
    %v47 = vadd.f32 %v45, %v46
    %v48 = vrot.slane %v47, 2
    %v49 = vadd.f32 %v47, %v48
    %v50 = vrot.slane %v49, 1
    %v51 = vadd.f32 %v49, %v50
    %s52 = vtos %v51
    %s53 = smax.f32 %s38, 1.0
    %v54 = vstv %s53
    %v55 = vrcp.pop %v54
    %s56 = vtos %v55
    %s57 = smul.f32 %s52, %s56
    %v58 = vlaneseq
    %v59 = vshrl.u32 %v58, 7
    %v60 = vlaneseq
    %v61 = vand.u32 %v60, 127
    %vm62 = vcmp.lt.s32.totalorder %v61, 126
    %v63 = vmul.u32 %v59, 126
    %v64 = vadd.s32 %v63, %v61
    %v65 = vstv %s35
    %vm66 = vcmp.lt.s32.totalorder %v64, %v65
    %vm67 = vmand %vm62, %vm66
    %68 = vrot.lane.b32.xlu0 %v39, 127
    %v69 = vpop.permute.xlu0 %68
    %70 = vrot.lane.b32.xlu0 %v39, 126
    %v71 = vpop.permute.xlu0 %70
    %v72 = vmul.f32 %v69, 2.0
    %v73 = vsub.f32 %v71, %v72
    %v74 = vadd.f32 %v73, %v39
    %s75 = ssub.s32 %s35, 2
    %v76 = vstv %s75
    %vm77 = vcmp.lt.s32.totalorder %v64, %v76
    %vm78 = vmand %vm62, %vm77
    %vm79 = vcmp.eq.f32.partialorder %v74, %v74
    %vm80 = vmand %vm78, %vm79
    %v81 = vand.u32 2147483647, %v74
    %v82 = vsel %vm80, %v81, 0.0
    %83 = vadd.xlane.f32.xlu0 %v82
    %v84 = vpop.xlane.xlu0 %83
    %v85 = vrot.slane %v84, 4
    %v86 = vadd.f32 %v84, %v85
    %v87 = vrot.slane %v86, 2
    %v88 = vadd.f32 %v86, %v87
    %v89 = vrot.slane %v88, 1
    %v90 = vadd.f32 %v88, %v89
    %s91 = vtos %v90
    %p92 = scmp.ge.s32.totalorder %s35, 3
    %s93 = ssub.f32 %s37, 2.0
    %s94 = smax.f32 %s93, 1.0
    %v95 = vstv %s94
    %v96 = vrcp.pop %v95
    %s97 = vtos %v96
    %s98 = smul.f32 %s91, %s97
    %s99 = scalar_select %p92, %s98, 0.0
    %s100 = ssub.f32 %s37, 1.0
    %s101 = smax.f32 %s100, 1.0
    %s102 = smax.f32 %s37, 1.0
    %v103 = vstv %s102
    %v104 = vrcp.pop %v103
    %s105 = vtos %v104
    %v106 = vcvt.s32.f32 %v64
    %v107 = vstv %s101
    %v108 = vrcp.pop %v107
    %s109 = vtos %v108
    %s110 = smul.f32 2.0, %s109
    %v111 = vstv %s110
    %v112 = vmul.f32 %v106, %v111
    %v113 = vsub.f32 %v112, 1.0
    %v114 = vmul.f32 %v113, %v113
    %v115 = vsub.f32 0.0, %v114
    %v116 = vsel %vm67, %v39, 0.0
    %117 = vadd.xlane.f32.xlu0 %v116
    %v118 = vpop.xlane.xlu0 %117
    %v119 = vrot.slane %v118, 4
    %v120 = vadd.f32 %v118, %v119
    %v121 = vrot.slane %v120, 2
    %v122 = vadd.f32 %v120, %v121
    %v123 = vrot.slane %v122, 1
    %v124 = vadd.f32 %v122, %v123
    %s125 = vtos %v124
    %v126 = vmul.f32 %v116, %v116
    %127 = vadd.xlane.f32.xlu0 %v126
    %v128 = vpop.xlane.xlu0 %127
    %v129 = vrot.slane %v128, 4
    %v130 = vadd.f32 %v128, %v129
    %v131 = vrot.slane %v130, 2
    %v132 = vadd.f32 %v130, %v131
    %v133 = vrot.slane %v132, 1
    %v134 = vadd.f32 %v132, %v133
    %s135 = vtos %v134
    %v136 = vmul.f32 %v116, %v115
    %137 = vadd.xlane.f32.xlu0 %v136
    %v138 = vpop.xlane.xlu0 %137
    %v139 = vrot.slane %v138, 4
    %v140 = vadd.f32 %v138, %v139
    %v141 = vrot.slane %v140, 2
    %v142 = vadd.f32 %v140, %v141
    %v143 = vrot.slane %v142, 1
    %v144 = vadd.f32 %v142, %v143
    %s145 = vtos %v144
    %s146 = sadd.f32 %s37, 1.0
    %s147 = smul.f32 %s37, %s146
    %s148 = smul.f32 %s101, 3.0
    %v149 = vstv %s148
    %v150 = vrcp.pop %v149
    %s151 = vtos %v150
    %s152 = smul.f32 %s147, %s151
    %s153 = sadd.f32 %s101, 1.0
    %s154 = smul.f32 %s148, %s101
    %s155 = smul.f32 %s154, %s101
    %s156 = smul.f32 %s101, 12.0
    %s157 = smul.f32 %s156, %s101
    %s158 = sadd.f32 %s155, %s157
    %s159 = smul.f32 %s101, 8.0
    %s160 = sadd.f32 %s158, %s159
    %s161 = ssub.f32 %s160, 8.0
    %s162 = smul.f32 %s153, %s161
    %s163 = smul.f32 %s101, 15.0
    %s164 = smul.f32 %s163, %s101
    %s165 = smul.f32 %s164, %s101
    %v166 = vstv %s165
    %v167 = vrcp.pop %v166
    %s168 = vtos %v167
    %s169 = smul.f32 %s162, %s168
    %s170 = ssub.f32 0.0, %s152
    %s171 = smul.f32 %s125, %s105
    %s172 = smul.f32 %s171, %s125
    %s173 = ssub.f32 %s135, %s172
    %s174 = smax.f32 %s173, 0.0
    %v175 = vstv %s101
    %v176 = vrcp.pop %v175
    %s177 = vtos %v176
    %s178 = smul.f32 %s174, %s177
    %p179 = scmp.gt.f32.partialorder %s178, 0.0
    %v180 = vstv %s178
    %v181 = vrsqrt.pop %v180
    %s182 = vtos %v181
    %s183 = scalar_select %p179, %s182, 1.0
    %s184 = smul.f32 %s171, %s170
    %s185 = ssub.f32 %s145, %s184
    %s186 = smul.f32 %s183, %s183
    %s187 = smul.f32 %s174, %s186
    %s188 = smul.f32 %s183, 2.0
    %s189 = smul.f32 %s188, %s185
    %s190 = ssub.f32 %s187, %s189
    %s191 = sadd.f32 %s190, %s169
    %p192 = scmp.ge.s32.totalorder %s35, 4
    %s193 = smul.f32 %s191, %s105
    %s194 = scalar_select %p192, %s193, 0.0
    %s195 = smul.f32 %s99, 0.3
    %s196 = sadd.f32 %s57, %s195
    %s197 = smul.f32 %s194, 0.3
    %s198 = sadd.f32 %s196, %s197
    %p199 = scmp.ne.f32.partialorder %s198, %s198
    %s200 = scalar_select %p199, 0.0, %s198
    %p201 = scmp.eq.f32.partialorder %s200, inf
    %s202 = scalar_select %p201, 3.4028235e+38, %s200
    %p203 = scmp.eq.f32.partialorder %s202, -inf
    %s204 = scalar_select %p203, -3.4028235e+38, %s202
    %s205 = scalar_lea.smem [#allocation7], 0
    %206 = sst [smem:[%s205]] %s204
    // Predicated region
    $region18: #{tpu_custom_call.1} parent=1 // pred_check
      _
    $region19: #{tpu_custom_call.1} parent=1 // pred_check_branch
      %208 = sbr.rel (0) target = $region21
    $region20: #{tpu_custom_call.1} parent=1 // pred_region
      %s210 = ssub.s32 16, 16
      %211 = vsyncadd [#allocation5], %s210
      %214 = dma.smem_to_hbm [#allocation7], 16, %s2, [#allocation5]
    $region21: #{tpu_custom_call.1} parent=1 // pred_fallthru
      _
    // Predicated region
    $region22: #{tpu_custom_call.1} parent=1 // pred_check
      _
    $region23: #{tpu_custom_call.1} parent=1 // pred_check_branch
      %216 = sbr.rel (0) target = $region25
    $region24: #{tpu_custom_call.1} parent=1 // pred_region
      %217 = dma.done [#allocation5], 16
    $region25: #{tpu_custom_call.1} parent=1 // pred_fallthru
      _
    %218 = sfence
    %219 = vsyncpa [#allocation3], 1
    %220 = vsyncpa [#allocation4], 1
    %221 = vsyncpa [#allocation5], 1

</llo_original>
